<compile_context>
chip_gen: v5e
topology: v5e:2x2
jax: 0.10.0
libtpu: 0.0.40
codegen_flags: <defaults>
</compile_context>

<pallas_src>
import functools
import math

import numpy as np
import jax
import jax.numpy as jnp
from jax.experimental import pallas as pl
from jax.experimental.pallas import tpu as pltpu


TILE_N_DEFAULT = 128      # destination-row tile (sublane axis)
TILE_SRC_DEFAULT = 128    # source-column tile (lane axis; multiple of 128)
VMEM_LIMIT_BYTES = 48 * 1024 * 1024
NEG_INF = -1e30


def _round_up(a, b):
    return (a + b - 1) // b * b


# ----------------------------- Pallas kernels --------------------------------

def proj_kernel(x_ref, w_ref, acat_ref, xp_ref, alpha_ref):
    """Xp = X @ W (bf16 MXU, f32 acc); alpha = Xp.bf16 @ [Al | Ar] (f32 acc)."""
    x = x_ref[...].astype(jnp.bfloat16)                               # [T, Fin]
    xp = jnp.dot(x, w_ref[...], preferred_element_type=jnp.float32)  # [T, H*C] f32
    xp_bf16 = xp.astype(jnp.bfloat16)
    alpha_ref[...] = jnp.dot(xp_bf16, acat_ref[...],
                             preferred_element_type=jnp.float32)     # [T, 2H]
    xp_ref[...] = xp_bf16


def attn_kernel(occ_ref, ar_ref, alt_ref, xp_ref, mask_ref, b_ref, o_ref,
                m_sc, l_sc, acc_sc, *, H, C, concat, apply_relu, neg_slope):
    """One (dst-tile, src-tile) step of masked multi-head attention.

    Online softmax: m_sc / l_sc / acc_sc carry the running rowmax, denominator
    and un-normalized aggregate across source tiles; finalize on the last one.
    """
    d = pl.program_id(0)
    si = pl.program_id(1)
    n_src = pl.num_programs(1)

    @pl.when(si == 0)
    def _init():
        m_sc[...] = jnp.full(m_sc.shape, NEG_INF, m_sc.dtype)
        l_sc[...] = jnp.zeros(l_sc.shape, l_sc.dtype)
        acc_sc[...] = jnp.zeros(acc_sc.shape, acc_sc.dtype)

    # Skip fully-masked (dst-tile, src-tile) blocks entirely.
    @pl.when(occ_ref[d, si] > 0)
    def _compute():
        ar = ar_ref[...]                                    # [T, H]   f32 (dst)
        al_t = alt_ref[...]                                 # [H, S]   f32 (src)
        xp = xp_ref[...]                                    # [S, H*C] bf16
        # int8 {0,1} mask -> additive bias (0 / -1e30), computed once per block
        nb = (1.0 - mask_ref[...].astype(jnp.float32)) * NEG_INF   # [T, S]

        m_all = m_sc[...]                                   # [T, H]
        l_all = l_sc[...]                                   # [T, H]
        acc_all = acc_sc[...]                               # [T, H*C]
        m_new_l, l_new_l, acc_new_l = [], [], []
        for h in range(H):
            s = ar[:, h:h + 1] + al_t[h:h + 1, :]           # [T, S]
            s = jnp.maximum(s, neg_slope * s)               # LeakyReLU
            s = s + nb
            m_old = m_all[:, h:h + 1]
            m_new = jnp.maximum(m_old, jnp.max(s, axis=-1, keepdims=True))
            a = jnp.exp(m_old - m_new)                      # [T, 1] rescale (f32)
            # bf16 exp: masked lanes still flush to exactly 0.
            p = jnp.exp((s - m_new).astype(jnp.bfloat16))   # [T, S] bf16
            l_new = a * l_all[:, h:h + 1] + jnp.sum(
                p.astype(jnp.float32), axis=-1, keepdims=True)
            agg = jnp.dot(p, xp[:, h * C:(h + 1) * C],
                          preferred_element_type=jnp.float32)        # [T, C]
            acc_new = a * acc_all[:, h * C:(h + 1) * C] + agg
            m_new_l.append(m_new)
            l_new_l.append(l_new)
            acc_new_l.append(acc_new)
        # single lane-dense scratch writes (no per-head masked stores)
        m_sc[...] = jnp.concatenate(m_new_l, axis=-1)
        l_sc[...] = jnp.concatenate(l_new_l, axis=-1)
        acc_sc[...] = jnp.concatenate(acc_new_l, axis=-1)

    @pl.when(si == n_src - 1)
    def _finalize():
        bias = b_ref[...]                                   # [1, out_dim]
        l_all = l_sc[...]
        acc_all = acc_sc[...]
        outs = []
        for h in range(H):
            denom = jnp.maximum(l_all[:, h:h + 1], 1e-9)    # padded rows: avoid 0
            inv = pl.reciprocal(denom, approx=True)         # EUP
            outs.append(acc_all[:, h * C:(h + 1) * C] * inv)
        if concat:
            out = jnp.concatenate(outs, axis=-1)            # [T, H*C]
        else:
            out = outs[0]
            for h in range(1, H):
                out = out + outs[h]
            out = out * (1.0 / H)                           # mean over heads
        out = out + bias
        if apply_relu:
            out = jnp.maximum(out, 0.0)
        o_ref[...] = out.astype(o_ref.dtype)                # one lane-dense store


# ------------------------------ layer wrapper ---------------------------------

def gat_layer(x_bf16, mask_i8, occ, w_bf16, a_cat_bf16, bias, *, H, C, concat,
              apply_relu, tile_n, tile_src, out_dtype, neg_slope=0.2):
    n_pad, f_in = x_bf16.shape
    hc = H * C
    out_dim = hc if concat else C
    nd = n_pad // tile_n
    ns = n_pad // tile_src

    # --- pass 1: projection (Xp and fused [alpha_l | alpha_r]) ---
    xp, alpha = pl.pallas_call(
        proj_kernel,
        grid=(nd,),
        in_specs=[
            pl.BlockSpec((tile_n, f_in), lambda r: (r, 0)),   # X rows
            pl.BlockSpec((f_in, hc), lambda r: (0, 0)),       # W (replicated)
            pl.BlockSpec((hc, 2 * H), lambda r: (0, 0)),      # [Al | Ar] (replicated)
        ],
        out_specs=[
            pl.BlockSpec((tile_n, hc), lambda r: (r, 0)),
            pl.BlockSpec((tile_n, 2 * H), lambda r: (r, 0)),
        ],
        out_shape=[
            jax.ShapeDtypeStruct((n_pad, hc), jnp.bfloat16),
            jax.ShapeDtypeStruct((n_pad, 2 * H), jnp.float32),
        ],
        compiler_params=pltpu.CompilerParams(
            dimension_semantics=("parallel",),
            vmem_limit_bytes=VMEM_LIMIT_BYTES),
    )(x_bf16, w_bf16, a_cat_bf16)

    ar = alpha[:, H:]                      # [n_pad, H]  destination coefficients
    al_t = jnp.transpose(alpha[:, :H])     # [H, n_pad]  source coefficients

    # --- pass 2: online-softmax attention over (dst-tile, src-tile) grid ---
    kernel = functools.partial(attn_kernel, H=H, C=C, concat=concat,
                               apply_relu=apply_relu, neg_slope=neg_slope)
    out = pl.pallas_call(
        kernel,
        grid_spec=pltpu.PrefetchScalarGridSpec(
            num_scalar_prefetch=1,                       # block-occupancy table
            grid=(nd, ns),
            in_specs=[
                pl.BlockSpec((tile_n, H), lambda d, s, occ_r: (d, 0)),      # ar
                pl.BlockSpec((H, tile_src), lambda d, s, occ_r: (0, s)),    # al^T
                pl.BlockSpec((tile_src, hc), lambda d, s, occ_r: (s, 0)),   # Xp
                pl.BlockSpec((tile_n, tile_src), lambda d, s, occ_r: (d, s)),  # mask
                pl.BlockSpec((1, out_dim), lambda d, s, occ_r: (0, 0)),     # bias
            ],
            out_specs=pl.BlockSpec((tile_n, out_dim), lambda d, s, occ_r: (d, 0)),
            scratch_shapes=[
                pltpu.VMEM((tile_n, H), jnp.float32),    # running rowmax
                pltpu.VMEM((tile_n, H), jnp.float32),    # running denominator
                pltpu.VMEM((tile_n, hc), jnp.float32),   # running accumulator
            ]),
        out_shape=jax.ShapeDtypeStruct((n_pad, out_dim), out_dtype),
        compiler_params=pltpu.CompilerParams(
            dimension_semantics=("parallel", "arbitrary"),
            vmem_limit_bytes=VMEM_LIMIT_BYTES),
    )(occ, ar, al_t, xp, mask_i8, bias)
    return out


# ------------------------------- glue / setup --------------------------------

def glorot(key, shape):
    std = math.sqrt(6.0 / (shape[-2] + shape[-1]))
    return jax.random.uniform(key, shape, jnp.float32, -std, std)


def block_diag_att(att):
    """att [H, C] -> block-diagonal [H*C, H] so xp @ A == (xp.view(N,H,C)*att).sum(-1)."""
    H, C = att.shape
    A = jnp.zeros((H * C, H), jnp.float32)
    for h in range(H):
        A = A.at[h * C:(h + 1) * C, h].set(att[h])
    return A


def build_mask_np(edge_index, num_nodes, padded):
    """Densify edge_index [2,E] into int8 mask[dst, src] (remove + re-add self loops)."""
    mask = np.zeros((padded, padded), np.int8)
    src, dst = np.asarray(edge_index)
    mask[dst, src] = 1
    idx = np.arange(num_nodes)
    mask[idx, idx] = 1          # add_self_loops on real nodes (padded rows stay masked)
    return mask


def standgat2_forward(x, edge_index, params, tile_n=TILE_N_DEFAULT,
                      tile_src=TILE_SRC_DEFAULT):
    N = x.shape[0]
    tile_src = max(128, _round_up(tile_src, 128))   # lane axis of mask / al^T blocks
    tile_n = max(32, _round_up(tile_n, 32))         # int8/bf16 sublane packing
    n_pad = _round_up(max(N, 1), math.lcm(tile_n, tile_src))
    nd, ns = n_pad // tile_n, n_pad // tile_src

    x_p = jnp.pad(x, ((0, n_pad - N), (0, 0))).astype(jnp.bfloat16)

    # int8 dense mask (2x less HBM/VMEM than bf16) + per-block occupancy table.
    mask_np = build_mask_np(edge_index, N, n_pad)
    occ_np = mask_np.reshape(nd, tile_n, ns, tile_src).any(axis=(1, 3)).astype(np.int32)
    mask_i8 = jnp.asarray(mask_np)
    occ = jnp.asarray(occ_np)

    # conv1: heads=4, concat=True, then ReLU; bf16 inter-layer activation.
    h = gat_layer(x_p, mask_i8, occ, params["w1_bf16"], params["a_cat1"], params["b1"],
                  H=params["H1"], C=params["C1"], concat=True, apply_relu=True,
                  tile_n=tile_n, tile_src=tile_src, out_dtype=jnp.bfloat16)
    # TODO(synk): F.dropout (features and attention coefficients) is identity in eval mode.
    # conv2: heads=1, concat=False (mean over the single head).
    out = gat_layer(h, mask_i8, occ, params["w2_bf16"], params["a_cat2"], params["b2"],
                    H=1, C=params["C2"], concat=False, apply_relu=False,
                    tile_n=tile_n, tile_src=tile_src, out_dtype=jnp.float32)
    return out[:N]


# ------------------------------ pure-JAX reference ---------------------------
# Mirrors the kernel's bf16 MXU operands (X@W, Xp@Acat, P@Xp) and the bf16
# inter-layer activation so tolerances stay tight; softmax itself stays f32.

def gat_ref(x, mask, w_bf16, a_cat_bf16, bias, H, C, concat, apply_relu):
    xp = jnp.dot(x.astype(jnp.bfloat16), w_bf16,
                 preferred_element_type=jnp.float32)             # [N, H*C] f32
    alpha = jnp.dot(xp.astype(jnp.bfloat16), a_cat_bf16,
                    preferred_element_type=jnp.float32)          # [N, 2H]
    al, ar = alpha[:, :H], alpha[:, H:]
    s = ar[:, None, :] + al[None, :, :]                          # [dst, src, H]
    s = jnp.where(s > 0, s, 0.2 * s)
    s = jnp.where(mask[:, :, None] > 0, s, NEG_INF)
    p = jnp.exp(s - s.max(axis=1, keepdims=True))
    p = jnp.where(mask[:, :, None] > 0, p, 0.0)
    p = p / p.sum(axis=1, keepdims=True)
    xph = xp.reshape(-1, H, C)
    out = jnp.einsum('ijh,jhc->ihc', p.astype(jnp.bfloat16), xph.astype(jnp.bfloat16),
                     preferred_element_type=jnp.float32)
    out = out.reshape(-1, H * C) if concat else out.mean(axis=1)
    out = out + bias
    return jnp.maximum(out, 0.0) if apply_relu else out


def standgat2_ref(x, edge_index, params):
    N = x.shape[0]
    mask = jnp.asarray(build_mask_np(edge_index, N, N).astype(np.float32))
    h = gat_ref(x, mask, params["w1_bf16"], params["a_cat1"], params["b1"],
                params["H1"], params["C1"], True, True).astype(jnp.bfloat16)
    return gat_ref(h, mask, params["w2_bf16"], params["a_cat2"], params["b2"],
                   1, params["C2"], False, False)


# ----------------------------------- main ------------------------------------

if __name__ == "__main__":
    N, nfeat, nhid, nclass = 300, 16, 32, 4
    num_head = 4
    head_dim = nhid // num_head

    key = jax.random.PRNGKey(0)
    kx, kw1, kal1, kar1, kb1, kw2, kal2, kar2, kb2 = jax.random.split(key, 9)

    x = jax.random.normal(kx, (N, nfeat), jnp.float32)

    # undirected path graph (no wrap-around) -> far off-diagonal attention blocks
    # are empty, exercising the occupancy-table block-skip path.
    src = np.concatenate([np.arange(N - 1), np.arange(1, N)])
    dst = np.concatenate([np.arange(1, N), np.arange(N - 1)])
    edge_index = np.stack([src, dst], axis=0)                    # [2, 2(N-1)]

    # conv1 parameters (Linear(nfeat, heads*head_dim, bias=False), att [1,H,C])
    W1 = glorot(kw1, (num_head * head_dim, nfeat))               # torch weight [out, in]
    att_l1 = glorot(kal1, (num_head, head_dim))
    att_r1 = glorot(kar1, (num_head, head_dim))
    b1 = 0.1 * jax.random.normal(kb1, (1, num_head * head_dim), jnp.float32)

    # conv2 parameters (Linear(nhid, nclass, bias=False), heads=1, concat=False)
    W2 = glorot(kw2, (nclass, nhid))
    att_l2 = glorot(kal2, (1, nclass))
    att_r2 = glorot(kar2, (1, nclass))
    b2 = 0.1 * jax.random.normal(kb2, (1, nclass), jnp.float32)

    params = dict(
        w1_bf16=W1.T.astype(jnp.bfloat16),
        a_cat1=jnp.concatenate([block_diag_att(att_l1), block_diag_att(att_r1)],
                               axis=1).astype(jnp.bfloat16),
        b1=b1, H1=num_head, C1=head_dim,
        w2_bf16=W2.T.astype(jnp.bfloat16),
        a_cat2=jnp.concatenate([block_diag_att(att_l2), block_diag_att(att_r2)],
                               axis=1).astype(jnp.bfloat16),
        b2=b2, C2=nclass,
    )

    # N=300 pads to 384 with 128x128 tiles -> 3x3 attention grid, multiple online
    # softmax steps per row tile, skipped empty blocks, and a partially padded tile.
    out = standgat2_forward(x, edge_index, params)
    out = jax.block_until_ready(out)

    ref = standgat2_ref(x, edge_index, params)
    assert out.shape == (N, nclass), out.shape
    np.testing.assert_allclose(np.asarray(out), np.asarray(ref), rtol=4e-2, atol=4e-2)

    print("KERNEL_OK")
</pallas_src>

<mosaic_0001>
module attributes {stable_mosaic.version = 11 : i64} {
  func.func @proj_kernel(%arg0: i32, %arg1: memref<128x16xbf16, #tpu.memory_space<vmem>>, %arg2: memref<16x32xbf16, #tpu.memory_space<vmem>>, %arg3: memref<32x8xbf16, #tpu.memory_space<vmem>>, %arg4: memref<128x32xbf16, #tpu.memory_space<vmem>>, %arg5: memref<128x8xf32, #tpu.memory_space<vmem>>) attributes {dimension_semantics = [#tpu.dimension_semantics<parallel>], iteration_bounds = array<i64: 3>, scalar_prefetch = 0 : i64, scratch_operands = 0 : i64, tpu.core_type = #tpu.core_type<tc>, window_params = [{transform_indices = @transform_0, window_bounds = array<i64: 128, 16>}, {pipeline_mode = #tpu.pipeline_mode<synchronous>, transform_indices = @transform_1, window_bounds = array<i64: 16, 32>}, {pipeline_mode = #tpu.pipeline_mode<synchronous>, transform_indices = @transform_2, window_bounds = array<i64: 32, 8>}, {transform_indices = @transform_3, window_bounds = array<i64: 128, 32>}, {transform_indices = @transform_4, window_bounds = array<i64: 128, 8>}]} {
    %c0 = arith.constant 0 : index
    %c0_0 = arith.constant 0 : index
    %0 = vector.load %arg1[%c0, %c0_0] : memref<128x16xbf16, #tpu.memory_space<vmem>>, vector<128x16xbf16>
    %c0_1 = arith.constant 0 : index
    %c0_2 = arith.constant 0 : index
    %1 = vector.load %arg2[%c0_1, %c0_2] : memref<16x32xbf16, #tpu.memory_space<vmem>>, vector<16x32xbf16>
    %cst = arith.constant dense<0.000000e+00> : vector<128x32xf32>
    %2 = tpu.matmul %0, %1, %cst {dimension_numbers = #tpu.dot_dimension_numbers<[1], [0], [0], [1], [0, 0, 1, 1], [], []>} : vector<128x16xbf16>, vector<16x32xbf16>, vector<128x32xf32> -> vector<128x32xf32>
    %3 = arith.truncf %2 : vector<128x32xf32> to vector<128x32xbf16>
    %c0_3 = arith.constant 0 : index
    %c0_4 = arith.constant 0 : index
    %4 = vector.load %arg3[%c0_3, %c0_4] : memref<32x8xbf16, #tpu.memory_space<vmem>>, vector<32x8xbf16>
    %cst_5 = arith.constant dense<0.000000e+00> : vector<128x8xf32>
    %5 = tpu.matmul %3, %4, %cst_5 {dimension_numbers = #tpu.dot_dimension_numbers<[1], [0], [0], [1], [0, 0, 1, 1], [], []>} : vector<128x32xbf16>, vector<32x8xbf16>, vector<128x8xf32> -> vector<128x8xf32>
    %c0_6 = arith.constant 0 : index
    %c0_7 = arith.constant 0 : index
    %6 = vector.load %arg5[%c0_6, %c0_7] : memref<128x8xf32, #tpu.memory_space<vmem>>, vector<128x8xf32>
    tpu.vector_store %arg5[%c0_6, %c0_7], %5 {strides = array<i32>} : memref<128x8xf32, #tpu.memory_space<vmem>>, vector<128x8xf32>,
    %c0_8 = arith.constant 0 : index
    %c0_9 = arith.constant 0 : index
    %7 = vector.load %arg4[%c0_8, %c0_9] : memref<128x32xbf16, #tpu.memory_space<vmem>>, vector<128x32xbf16>
    tpu.vector_store %arg4[%c0_8, %c0_9], %3 {strides = array<i32>} : memref<128x32xbf16, #tpu.memory_space<vmem>>, vector<128x32xbf16>,
    return
  }
  func.func @transform_0(%arg0: i32) -> (i32, i32) {
    %c0_i32 = arith.constant 0 : i32
    %c0_i32_0 = arith.constant 0 : i32
    return %arg0, %c0_i32 : i32, i32
  }
  func.func @transform_1(%arg0: i32) -> (i32, i32) {
    %c0_i32 = arith.constant 0 : i32
    %c0_i32_0 = arith.constant 0 : i32
    %c0_i32_1 = arith.constant 0 : i32
    return %c0_i32, %c0_i32_0 : i32, i32
  }
  func.func @transform_2(%arg0: i32) -> (i32, i32) {
    %c0_i32 = arith.constant 0 : i32
    %c0_i32_0 = arith.constant 0 : i32
    %c0_i32_1 = arith.constant 0 : i32
    return %c0_i32, %c0_i32_0 : i32, i32
  }
  func.func @transform_3(%arg0: i32) -> (i32, i32) {
    %c0_i32 = arith.constant 0 : i32
    %c0_i32_0 = arith.constant 0 : i32
    return %arg0, %c0_i32 : i32, i32
  }
  func.func @transform_4(%arg0: i32) -> (i32, i32) {
    %c0_i32 = arith.constant 0 : i32
    %c0_i32_0 = arith.constant 0 : i32
    return %arg0, %c0_i32 : i32, i32
  }
}

</mosaic_0001>

<llo_original>
// kernel: tpu_custom_call.1
$region0: #{tpu_custom_call.1}
  #allocation0 [shape = 'u32[]', space=smem, size = 0x4, offset = 0x4, fixed_abs, tag = 'smem constant byte address 0x4 - core index']
  #allocation1 [shape = 'u32[72,128]{1,0:T(1,128)}', space=vmem, size = 0x9000, scoped, tag = 'internal scratch']
  %s0 = inlined_call_operand.vmem [shape: bf16[384,16], index: 0, kind: input, shape index: {}]
  %s1 = inlined_call_operand.vmem [shape: bf16[16,32], index: 1, kind: input, shape index: {}]
  %s2 = inlined_call_operand.vmem [shape: bf16[32,8], index: 2, kind: input, shape index: {}]
  %s3 = inlined_call_operand.vmem [shape: bf16[384,32], index: 3, kind: output, shape index: {0}]
  %s4 = inlined_call_operand.vmem [shape: f32[384,8], index: 4, kind: output, shape index: {1}]
  %5 = xla_tuple %s3, %s4
  %s6 = sld [smem:[#allocation0]]
  $region53: #{tpu_custom_call.1} parent=0
    _
  %s8 = ssub.s32 1, %s6
  %s9 = scalar_select 0, %s8, %s6
  loop: start=0, step=1, limit=5
  $region2: #{tpu_custom_call.1} parent=0 // loop_pre_header
    _
  $region3: #{tpu_custom_call.1} parent=0 // loop_header
    %s11 = sphi 0, %s15
    %p12 = scmp.ge.s32.totalorder %s11, 5
    %s21 = sphi 0, %s23
    %s24 = sphi 0, %s21
    %s25 = sphi 0, %s24
    %s41 = sphi 0, %s25
    %s45 = sphi 0, %s45
    %s47 = sphi 0, %s45
    %s48 = sphi 0, %s47
    %s62 = sphi 0, %s48
    %s66 = sphi 0, %s66
    %s68 = sphi 0, %s66
    %s69 = sphi 0, %s68
    %s83 = sphi 0, %s69
    %s89 = sphi 0, %s91
    %s92 = sphi 0, %s89
    %s93 = sphi 0, %s92
    %s109 = sphi 0, %s93
    %s115 = sphi 0, %s117
    %s118 = sphi 0, %s115
    %s119 = sphi 0, %s118
    %s135 = sphi 0, %s119
  $region4: #{tpu_custom_call.1} parent=0 // loop_header_branch
    %14 = sbr.rel (%p12) target = $region8
  $region5: #{tpu_custom_call.1} parent=0 // loop_body
    %s16 = ssub.s32 %s11, 1
    %s17 = ssub.s32 %s11, 2
    %s18 = sadd.s32 %s11, 1
    %s19 = ssub.s32 %s11, %s18
    %p20 = scmp.eq.s32.totalorder %s19, 0
    %s22 = sadd.s32 %s21, 1
    %s23 = scalar_select %p20, %s21, %s22
    %p26 = pneg %p20
    %p27 = scmp.eq.s32.totalorder %s11, 2
    %p28 = por %p26, %p27
    %p29 = scmp.ne.s32.totalorder %s21, %s24
    %p30 = scmp.eq.s32.totalorder %s11, 0
    %p31 = por %p29, %p30
    %p32 = scmp.ne.s32.totalorder %s21, %s24
    %p33 = scmp.eq.s32.totalorder %s16, 2
    %p34 = por %p32, %p33
    %p35 = scmp.ne.s32.totalorder %s24, %s25
    %p36 = scmp.eq.s32.totalorder %s16, 0
    %p37 = por %p35, %p36
    %p38 = scmp.ne.s32.totalorder %s24, %s25
    %p39 = scmp.eq.s32.totalorder %s17, 2
    %p40 = por %p38, %p39
    %p42 = scmp.ne.s32.totalorder %s25, %s41
    %p43 = scmp.eq.s32.totalorder %s17, 0
    %p44 = por %p42, %p43
    %s46 = sadd.s32 %s45, 1
    %p49 = scmp.eq.s32.totalorder %s11, 2
    %p50 = scmp.ne.s32.totalorder %s45, %s47
    %p51 = scmp.eq.s32.totalorder %s11, 0
    %p52 = por %p50, %p51
    %p53 = scmp.ne.s32.totalorder %s45, %s47
    %p54 = scmp.eq.s32.totalorder %s16, 2
    %p55 = por %p53, %p54
    %p56 = scmp.ne.s32.totalorder %s47, %s48
    %p57 = scmp.eq.s32.totalorder %s16, 0
    %p58 = por %p56, %p57
    %p59 = scmp.ne.s32.totalorder %s47, %s48
    %p60 = scmp.eq.s32.totalorder %s17, 2
    %p61 = por %p59, %p60
    %p63 = scmp.ne.s32.totalorder %s48, %s62
    %p64 = scmp.eq.s32.totalorder %s17, 0
    %p65 = por %p63, %p64
    %s67 = sadd.s32 %s66, 1
    %p70 = scmp.eq.s32.totalorder %s11, 2
    %p71 = scmp.ne.s32.totalorder %s66, %s68
    %p72 = scmp.eq.s32.totalorder %s11, 0
    %p73 = por %p71, %p72
    %p74 = scmp.ne.s32.totalorder %s66, %s68
    %p75 = scmp.eq.s32.totalorder %s16, 2
    %p76 = por %p74, %p75
    %p77 = scmp.ne.s32.totalorder %s68, %s69
    %p78 = scmp.eq.s32.totalorder %s16, 0
    %p79 = por %p77, %p78
    %p80 = scmp.ne.s32.totalorder %s68, %s69
    %p81 = scmp.eq.s32.totalorder %s17, 2
    %p82 = por %p80, %p81
    %p84 = scmp.ne.s32.totalorder %s69, %s83
    %p85 = scmp.eq.s32.totalorder %s17, 0
    %p86 = por %p84, %p85
    %s87 = ssub.s32 %s11, %s18
    %p88 = scmp.eq.s32.totalorder %s87, 0
    %s90 = sadd.s32 %s89, 1
    %s91 = scalar_select %p88, %s89, %s90
    %p94 = pneg %p88
    %p95 = scmp.eq.s32.totalorder %s11, 2
    %p96 = por %p94, %p95
    %p97 = scmp.ne.s32.totalorder %s89, %s92
    %p98 = scmp.eq.s32.totalorder %s11, 0
    %p99 = por %p97, %p98
    %p100 = scmp.ne.s32.totalorder %s89, %s92
    %p101 = scmp.eq.s32.totalorder %s16, 2
    %p102 = por %p100, %p101
    %p103 = scmp.ne.s32.totalorder %s92, %s93
    %p104 = scmp.eq.s32.totalorder %s16, 0
    %p105 = por %p103, %p104
    %p106 = scmp.ne.s32.totalorder %s92, %s93
    %p107 = scmp.eq.s32.totalorder %s17, 2
    %p108 = por %p106, %p107
    %p110 = scmp.ne.s32.totalorder %s93, %s109
    %p111 = scmp.eq.s32.totalorder %s17, 0
    %p112 = por %p110, %p111
    %s113 = ssub.s32 %s11, %s18
    %p114 = scmp.eq.s32.totalorder %s113, 0
    %s116 = sadd.s32 %s115, 1
    %s117 = scalar_select %p114, %s115, %s116
    %p120 = pneg %p114
    %p121 = scmp.eq.s32.totalorder %s11, 2
    %p122 = por %p120, %p121
    %p123 = scmp.ne.s32.totalorder %s115, %s118
    %p124 = scmp.eq.s32.totalorder %s11, 0
    %p125 = por %p123, %p124
    %p126 = scmp.ne.s32.totalorder %s115, %s118
    %p127 = scmp.eq.s32.totalorder %s16, 2
    %p128 = por %p126, %p127
    %p129 = scmp.ne.s32.totalorder %s118, %s119
    %p130 = scmp.eq.s32.totalorder %s16, 0
    %p131 = por %p129, %p130
    %p132 = scmp.ne.s32.totalorder %s118, %s119
    %p133 = scmp.eq.s32.totalorder %s17, 2
    %p134 = por %p132, %p133
    %p136 = scmp.ne.s32.totalorder %s119, %s135
    %p137 = scmp.eq.s32.totalorder %s17, 0
    %p138 = por %p136, %p137
    %p139 = scmp.le.s32.totalorder 1, %s11
    %p140 = scmp.lt.s32.totalorder %s11, 4
    %p141 = pnand %p139, %p140
    %p142 = pneg %p141
    // Predicated region
    $region9: #{tpu_custom_call.1} parent=5 // pred_check
      _
    $region10: #{tpu_custom_call.1} parent=5 // pred_check_branch
      %144 = sbr.rel (%p141) target = $region12
    $region11: #{tpu_custom_call.1} parent=5 // pred_region
      %s145 = ssub.s32 %s11, 1
      // Predicated region
      $region13: #{tpu_custom_call.1} parent=11 // pred_check
        %p146 = pneg %p58
      $region14: #{tpu_custom_call.1} parent=11 // pred_check_branch
        %148 = sbr.rel (%p146) target = $region16
      $region15: #{tpu_custom_call.1} parent=11 // pred_region
        _
      $region16: #{tpu_custom_call.1} parent=11 // pred_fallthru
        _
      // Predicated region
      $region17: #{tpu_custom_call.1} parent=11 // pred_check
        %p149 = pneg %p79
      $region18: #{tpu_custom_call.1} parent=11 // pred_check_branch
        %151 = sbr.rel (%p149) target = $region20
      $region19: #{tpu_custom_call.1} parent=11 // pred_region
        _
      $region20: #{tpu_custom_call.1} parent=11 // pred_fallthru
        _
    $region12: #{tpu_custom_call.1} parent=5 // pred_fallthru
      _
    %p152 = scmp.lt.s32.totalorder %s11, 3
    // Predicated region
    $region21: #{tpu_custom_call.1} parent=5 // pred_check
      %p153 = pneg %p152
    $region22: #{tpu_custom_call.1} parent=5 // pred_check_branch
      %155 = sbr.rel (%p153) target = $region24
    $region23: #{tpu_custom_call.1} parent=5 // pred_region
      // Predicated region
      $region25: #{tpu_custom_call.1} parent=23 // pred_check
        %p156 = pneg %p31
      $region26: #{tpu_custom_call.1} parent=23 // pred_check_branch
        %158 = sbr.rel (%p156) target = $region28
      $region27: #{tpu_custom_call.1} parent=23 // pred_region
        %s159 = smul.u32 16, %s11
        %p160 = scmp.lt.s32.totalorder %s159, 47
        %s161 = scalar_select %p160, %s159, 47
        %s162 = smul.addr %s161, 4
        %s163 = scalar_lea.vmem %s0, %s162
        %s164 = smul.u32 16, %s11
      $region28: #{tpu_custom_call.1} parent=23 // pred_fallthru
        _
    $region24: #{tpu_custom_call.1} parent=5 // pred_fallthru
      _
    %p165 = scmp.le.s32.totalorder 1, %s11
    %p166 = scmp.lt.s32.totalorder %s11, 4
    %p167 = pnand %p165, %p166
    %p168 = pneg %p167
    // Predicated region
    $region29: #{tpu_custom_call.1} parent=5 // pred_check
      _
    $region30: #{tpu_custom_call.1} parent=5 // pred_check_branch
      %170 = sbr.rel (%p167) target = $region32
    $region31: #{tpu_custom_call.1} parent=5 // pred_region
      %s171 = ssub.s32 %s11, 1
      %s172 = smul.u32 16, %s16
      %p173 = scmp.lt.s32.totalorder %s172, 47
      %s174 = scalar_select %p173, %s172, 47
      %s175 = smul.addr %s174, 4
      %s176 = scalar_lea.vmem %s0, %s175
      %p177 = pneg %p37
      %p178 = pneg %p34
      %p179 = pneg %p58
      %p180 = pneg %p55
      %p181 = pneg %p79
      %p182 = pneg %p76
      %p183 = pneg %p105
      %p184 = pneg %p102
      %s185 = smul.u32 16, %s16
      %p186 = scmp.lt.s32.totalorder %s185, 47
      %s187 = scalar_select %p186, %s185, 47
      %s188 = smul.addr %s187, 4
      %s189 = scalar_lea.vmem %s3, %s188
      %p190 = pneg %p131
      %p191 = pneg %p128
      %s192 = smul.u32 16, %s16
      %p193 = scmp.lt.s32.totalorder %s192, 47
      %s194 = scalar_select %p193, %s192, 47
      %s195 = smul.addr %s194, 8
      %s196 = scalar_lea.vmem %s4, %s195
      %s197 = smul.u32 16, %s16
      %p198 = scmp.lt.s32.totalorder %s197, 47
      %s199 = scalar_select %p198, %s197, 47
      %s200 = smul.addr %s199, 4
      %s201 = scalar_lea.vmem %s0, %s200
      %s202 = smul.u32 16, %s16
      %s203 = smul.u32 16, %s16
      %p204 = scmp.lt.s32.totalorder %s203, 47
      %s205 = scalar_select %p204, %s203, 47
      %s206 = smul.addr %s205, 4
      %s207 = scalar_lea.vmem %s3, %s206
      %s208 = smul.u32 16, %s16
      %s209 = smul.u32 16, %s16
      %p210 = scmp.lt.s32.totalorder %s209, 47
      %s211 = scalar_select %p210, %s209, 47
      %s212 = smul.addr %s211, 8
      %s213 = scalar_lea.vmem %s4, %s212
      %s214 = smul.u32 16, %s16
      %v216 = vld [vmem:[%s201] sm:$0xf]
      %v217 = vld [vmem:[%s201 + $0x4] sm:$0xf]
      %v218 = vld [vmem:[%s201 + $0x8] sm:$0xf]
      %v219 = vld [vmem:[%s201 + $0xc] sm:$0xf]
      %v220 = vld [vmem:[%s201 + $0x10] sm:$0xf]
      %v221 = vld [vmem:[%s201 + $0x14] sm:$0xf]
      %v222 = vld [vmem:[%s201 + $0x18] sm:$0xf]
      %v223 = vld [vmem:[%s201 + $0x1c] sm:$0xf]
      %v224 = vld [vmem:[%s201 + $0x20] sm:$0xf]
      %v225 = vld [vmem:[%s201 + $0x24] sm:$0xf]
      %v226 = vld [vmem:[%s201 + $0x28] sm:$0xf]
      %v227 = vld [vmem:[%s201 + $0x2c] sm:$0xf]
      %v228 = vld [vmem:[%s201 + $0x30] sm:$0xf]
      %v229 = vld [vmem:[%s201 + $0x34] sm:$0xf]
      %v230 = vld [vmem:[%s201 + $0x38] sm:$0xf]
      %v231 = vld [vmem:[%s201 + $0x3c] sm:$0xf]
      %v232 = vld [vmem:[%s1] sm:$0xf]
      %v233 = vld [vmem:[%s1 + $0x4] sm:$0xf]
      %v250 = vunpack.c.l.b16 %v216
      %v251 = vunpack.c.l.b16 %v217
      %v252 = vunpack.c.l.b16 %v218
      %v253 = vunpack.c.l.b16 %v219
      %v254 = vunpack.c.l.b16 %v220
      %v255 = vunpack.c.l.b16 %v221
      %v256 = vunpack.c.l.b16 %v222
      %v257 = vunpack.c.l.b16 %v223
      %v258 = vunpack.c.l.b16 %v224
      %v259 = vunpack.c.l.b16 %v225
      %v260 = vunpack.c.l.b16 %v226
      %v261 = vunpack.c.l.b16 %v227
      %v262 = vunpack.c.l.b16 %v228
      %v263 = vunpack.c.l.b16 %v229
      %v264 = vunpack.c.l.b16 %v230
      %v265 = vunpack.c.l.b16 %v231
      %v266 = vpack.c.b16 %v251, %v250
      %v267 = vpack.c.b16 %v253, %v252
      %v268 = vpack.c.b16 %v255, %v254
      %v269 = vpack.c.b16 %v257, %v256
      %v270 = vpack.c.b16 %v259, %v258
      %v271 = vpack.c.b16 %v261, %v260
      %v272 = vpack.c.b16 %v263, %v262
      %v273 = vpack.c.b16 %v265, %v264
      %v276 = vunpack.c.l.b16 %v232
      %v277 = vunpack.c.l.b16 %v233
      %v278 = vpack.c.b16 %v277, %v276
      %vm280 = vcmask 130048
      %v282 = vsel %vm280, %v266, 0
      %v285 = vsel %vm280, %v267, 0
      %v288 = vsel %vm280, %v268, 0
      %v291 = vsel %vm280, %v269, 0
      %v294 = vsel %vm280, %v270, 0
      %v297 = vsel %vm280, %v271, 0
      %v300 = vsel %vm280, %v272, 0
      %v303 = vsel %vm280, %v273, 0
      %305 = vmatpush.bf16.msra.mxu0 0
      %306 = vmatpush.bf16.msra.mxu0 0
      %307 = vmatpush.bf16.msra.mxu0 0
      %308 = vmatpush.bf16.msra.mxu0 0
      %309 = vmatpush.bf16.msra.mxu0 0
      %310 = vmatpush.bf16.msra.mxu0 0
      %311 = vmatpush.bf16.msra.mxu0 0
      %312 = vmatpush.bf16.msra.mxu0 %v278
      %313 = vmatmul.bf16.gmra.mxu0 %v282
      %v314 = vpop.f32.mrf.mxu0
      %v315 = vadd.f32 0.0, %v314
      %v316 = vpop.f32.mrf.mxu0
      %v317 = vadd.f32 0.0, %v316
      %318 = vmatmul.bf16.gmra.mxu0 %v285
      %v319 = vpop.f32.mrf.mxu0
      %v320 = vadd.f32 0.0, %v319
      %v321 = vpop.f32.mrf.mxu0
      %v322 = vadd.f32 0.0, %v321
      %323 = vmatmul.bf16.gmra.mxu0 %v288
      %v324 = vpop.f32.mrf.mxu0
      %v325 = vadd.f32 0.0, %v324
      %v326 = vpop.f32.mrf.mxu0
      %v327 = vadd.f32 0.0, %v326
      %328 = vmatmul.bf16.gmra.mxu0 %v291
      %v329 = vpop.f32.mrf.mxu0
      %v330 = vadd.f32 0.0, %v329
      %v331 = vpop.f32.mrf.mxu0
      %v332 = vadd.f32 0.0, %v331
      %333 = vmatmul.bf16.gmra.mxu0 %v294
      %v334 = vpop.f32.mrf.mxu0
      %v335 = vadd.f32 0.0, %v334
      %v336 = vpop.f32.mrf.mxu0
      %v337 = vadd.f32 0.0, %v336
      %338 = vmatmul.bf16.gmra.mxu0 %v297
      %v339 = vpop.f32.mrf.mxu0
      %v340 = vadd.f32 0.0, %v339
      %v341 = vpop.f32.mrf.mxu0
      %v342 = vadd.f32 0.0, %v341
      %343 = vmatmul.bf16.gmra.mxu0 %v300
      %v344 = vpop.f32.mrf.mxu0
      %v345 = vadd.f32 0.0, %v344
      %v346 = vpop.f32.mrf.mxu0
      %v347 = vadd.f32 0.0, %v346
      %348 = vmatmul.bf16.gmra.mxu0 %v303
      %v349 = vpop.f32.mrf.mxu0
      %v350 = vadd.f32 0.0, %v349
      %v351 = vpop.f32.mrf.mxu0
      %v352 = vadd.f32 0.0, %v351
      %353 = vdwg.mxu0
      %v354 = vpack.c.bf16 %v315, %v315
      %v355 = vpack.c.bf16 %v317, %v317
      %v356 = vpack.c.bf16 %v320, %v320
      %v357 = vpack.c.bf16 %v322, %v322
      %v358 = vpack.c.bf16 %v325, %v325
      %v359 = vpack.c.bf16 %v327, %v327
      %v360 = vpack.c.bf16 %v330, %v330
      %v361 = vpack.c.bf16 %v332, %v332
      %v362 = vpack.c.bf16 %v335, %v335
      %v363 = vpack.c.bf16 %v337, %v337
      %v364 = vpack.c.bf16 %v340, %v340
      %v365 = vpack.c.bf16 %v342, %v342
      %v366 = vpack.c.bf16 %v345, %v345
      %v367 = vpack.c.bf16 %v347, %v347
      %v368 = vpack.c.bf16 %v350, %v350
      %v369 = vpack.c.bf16 %v352, %v352
      %v370 = vld [vmem:[%s2] sm:$0xf]
      %v371 = vld [vmem:[%s2 + $0x4] sm:$0xf]
      %v372 = vld [vmem:[%s2 + $0x8] sm:$0xf]
      %v373 = vld [vmem:[%s2 + $0xc] sm:$0xf]
      %v390 = vunpack.c.l.b16 %v354
      %v391 = vunpack.c.l.b16 %v355
      %v392 = vunpack.c.l.b16 %v356
      %v393 = vunpack.c.l.b16 %v357
      %v394 = vunpack.c.l.b16 %v358
      %v395 = vunpack.c.l.b16 %v359
      %v396 = vunpack.c.l.b16 %v360
      %v397 = vunpack.c.l.b16 %v361
      %v398 = vunpack.c.l.b16 %v362
      %v399 = vunpack.c.l.b16 %v363
      %v400 = vunpack.c.l.b16 %v364
      %v401 = vunpack.c.l.b16 %v365
      %v402 = vunpack.c.l.b16 %v366
      %v403 = vunpack.c.l.b16 %v367
      %v404 = vunpack.c.l.b16 %v368
      %v405 = vunpack.c.l.b16 %v369
      %v406 = vpack.c.b16 %v391, %v390
      %v407 = vpack.c.b16 %v393, %v392
      %v408 = vpack.c.b16 %v395, %v394
      %v409 = vpack.c.b16 %v397, %v396
      %v410 = vpack.c.b16 %v399, %v398
      %v411 = vpack.c.b16 %v401, %v400
      %v412 = vpack.c.b16 %v403, %v402
      %v413 = vpack.c.b16 %v405, %v404
      %v418 = vunpack.c.l.b16 %v370
      %v419 = vunpack.c.l.b16 %v371
      %v420 = vunpack.c.l.b16 %v372
      %v421 = vunpack.c.l.b16 %v373
      %v422 = vpack.c.b16 %v419, %v418
      %v423 = vpack.c.b16 %v421, %v420
      %vm426 = vcmask 261120
      %v428 = vsel %vm426, %v406, 0
      %v431 = vsel %vm426, %v407, 0
      %v434 = vsel %vm426, %v408, 0
      %v437 = vsel %vm426, %v409, 0
      %v440 = vsel %vm426, %v410, 0
      %v443 = vsel %vm426, %v411, 0
      %v446 = vsel %vm426, %v412, 0
      %v449 = vsel %vm426, %v413, 0
      %451 = vmatpush.bf16.msra.mxu0 0
      %452 = vmatpush.bf16.msra.mxu0 0
      %453 = vmatpush.bf16.msra.mxu0 0
      %454 = vmatpush.bf16.msra.mxu0 0
      %455 = vmatpush.bf16.msra.mxu0 0
      %456 = vmatpush.bf16.msra.mxu0 0
      %457 = vmatpush.bf16.msra.mxu0 %v423
      %458 = vmatpush.bf16.msra.mxu0 %v422
      %459 = vmatmul.bf16.gmra.mxu0 %v428
      %v460 = vpop.f32.mrf.mxu0
      %v461 = vadd.f32 0.0, %v460
      %v462 = vpop.f32.mrf.mxu0
      %v463 = vadd.f32 0.0, %v462
      %464 = vmatmul.bf16.gmra.mxu0 %v431
      %v465 = vpop.f32.mrf.mxu0
      %v466 = vadd.f32 0.0, %v465
      %v467 = vpop.f32.mrf.mxu0
      %v468 = vadd.f32 0.0, %v467
      %469 = vmatmul.bf16.gmra.mxu0 %v434
      %v470 = vpop.f32.mrf.mxu0
      %v471 = vadd.f32 0.0, %v470
      %v472 = vpop.f32.mrf.mxu0
      %v473 = vadd.f32 0.0, %v472
      %474 = vmatmul.bf16.gmra.mxu0 %v437
      %v475 = vpop.f32.mrf.mxu0
      %v476 = vadd.f32 0.0, %v475
      %v477 = vpop.f32.mrf.mxu0
      %v478 = vadd.f32 0.0, %v477
      %479 = vmatmul.bf16.gmra.mxu0 %v440
      %v480 = vpop.f32.mrf.mxu0
      %v481 = vadd.f32 0.0, %v480
      %v482 = vpop.f32.mrf.mxu0
      %v483 = vadd.f32 0.0, %v482
      %484 = vmatmul.bf16.gmra.mxu0 %v443
      %v485 = vpop.f32.mrf.mxu0
      %v486 = vadd.f32 0.0, %v485
      %v487 = vpop.f32.mrf.mxu0
      %v488 = vadd.f32 0.0, %v487
      %489 = vmatmul.bf16.gmra.mxu0 %v446
      %v490 = vpop.f32.mrf.mxu0
      %v491 = vadd.f32 0.0, %v490
      %v492 = vpop.f32.mrf.mxu0
      %v493 = vadd.f32 0.0, %v492
      %494 = vmatmul.bf16.gmra.mxu0 %v449
      %v495 = vpop.f32.mrf.mxu0
      %v496 = vadd.f32 0.0, %v495
      %v497 = vpop.f32.mrf.mxu0
      %v498 = vadd.f32 0.0, %v497
      %499 = vdwg.mxu0
      %vm500 = vcmask 64512
      %501 = vst.msk [vmem:[%s213] sm:$0xff] %vm500, %v461
      %502 = vst.msk [vmem:[%s213 + $0x8] sm:$0xff] %vm500, %v463
      %503 = vst.msk [vmem:[%s213 + $0x10] sm:$0xff] %vm500, %v466
      %504 = vst.msk [vmem:[%s213 + $0x18] sm:$0xff] %vm500, %v468
      %505 = vst.msk [vmem:[%s213 + $0x20] sm:$0xff] %vm500, %v471
      %506 = vst.msk [vmem:[%s213 + $0x28] sm:$0xff] %vm500, %v473
      %507 = vst.msk [vmem:[%s213 + $0x30] sm:$0xff] %vm500, %v476
      %508 = vst.msk [vmem:[%s213 + $0x38] sm:$0xff] %vm500, %v478
      %509 = vst.msk [vmem:[%s213 + $0x40] sm:$0xff] %vm500, %v481
      %510 = vst.msk [vmem:[%s213 + $0x48] sm:$0xff] %vm500, %v483
      %511 = vst.msk [vmem:[%s213 + $0x50] sm:$0xff] %vm500, %v486
      %512 = vst.msk [vmem:[%s213 + $0x58] sm:$0xff] %vm500, %v488
      %513 = vst.msk [vmem:[%s213 + $0x60] sm:$0xff] %vm500, %v491
      %514 = vst.msk [vmem:[%s213 + $0x68] sm:$0xff] %vm500, %v493
      %515 = vst.msk [vmem:[%s213 + $0x70] sm:$0xff] %vm500, %v496
      %516 = vst.msk [vmem:[%s213 + $0x78] sm:$0xff] %vm500, %v498
      %vm517 = vcmask 257024
      %518 = vst.msk [vmem:[%s207] sm:$0xf] %vm517, %v354
      %519 = vst.msk [vmem:[%s207 + $0x4] sm:$0xf] %vm517, %v355
      %520 = vst.msk [vmem:[%s207 + $0x8] sm:$0xf] %vm517, %v356
      %521 = vst.msk [vmem:[%s207 + $0xc] sm:$0xf] %vm517, %v357
      %522 = vst.msk [vmem:[%s207 + $0x10] sm:$0xf] %vm517, %v358
      %523 = vst.msk [vmem:[%s207 + $0x14] sm:$0xf] %vm517, %v359
      %524 = vst.msk [vmem:[%s207 + $0x18] sm:$0xf] %vm517, %v360
      %525 = vst.msk [vmem:[%s207 + $0x1c] sm:$0xf] %vm517, %v361
      %526 = vst.msk [vmem:[%s207 + $0x20] sm:$0xf] %vm517, %v362
      %527 = vst.msk [vmem:[%s207 + $0x24] sm:$0xf] %vm517, %v363
      %528 = vst.msk [vmem:[%s207 + $0x28] sm:$0xf] %vm517, %v364
      %529 = vst.msk [vmem:[%s207 + $0x2c] sm:$0xf] %vm517, %v365
      %530 = vst.msk [vmem:[%s207 + $0x30] sm:$0xf] %vm517, %v366
      %531 = vst.msk [vmem:[%s207 + $0x34] sm:$0xf] %vm517, %v367
      %532 = vst.msk [vmem:[%s207 + $0x38] sm:$0xf] %vm517, %v368
      %533 = vst.msk [vmem:[%s207 + $0x3c] sm:$0xf] %vm517, %v369
      %s534 = smul.u32 16, %s16
      %p535 = scmp.lt.s32.totalorder %s534, 47
      %s536 = scalar_select %p535, %s534, 47
      %s537 = smul.addr %s536, 4
      %s538 = scalar_lea.vmem %s3, %s537
      %s539 = smul.u32 16, %s16
      %p540 = scmp.lt.s32.totalorder %s539, 47
      %s541 = scalar_select %p540, %s539, 47
      %s542 = smul.addr %s541, 8
      %s543 = scalar_lea.vmem %s4, %s542
      // Predicated region
      $region33: #{tpu_custom_call.1} parent=31 // pred_check
        %p544 = pneg %p102
      $region34: #{tpu_custom_call.1} parent=31 // pred_check_branch
        %546 = sbr.rel (%p544) target = $region36
      $region35: #{tpu_custom_call.1} parent=31 // pred_region
        %s547 = smul.u32 16, %s16
      $region36: #{tpu_custom_call.1} parent=31 // pred_fallthru
        _
      // Predicated region
      $region37: #{tpu_custom_call.1} parent=31 // pred_check
        %p548 = pneg %p128
      $region38: #{tpu_custom_call.1} parent=31 // pred_check_branch
        %550 = sbr.rel (%p548) target = $region40
      $region39: #{tpu_custom_call.1} parent=31 // pred_region
        %s551 = smul.u32 16, %s16
      $region40: #{tpu_custom_call.1} parent=31 // pred_fallthru
        _
    $region32: #{tpu_custom_call.1} parent=5 // pred_fallthru
      _
    %p552 = scmp.le.s32.totalorder 2, %s11
    // Predicated region
    $region41: #{tpu_custom_call.1} parent=5 // pred_check
      %p553 = pneg %p552
    $region42: #{tpu_custom_call.1} parent=5 // pred_check_branch
      %555 = sbr.rel (%p553) target = $region44
    $region43: #{tpu_custom_call.1} parent=5 // pred_region
      %s556 = ssub.s32 %s11, 2
      // Predicated region
      $region45: #{tpu_custom_call.1} parent=43 // pred_check
        %p557 = pneg %p108
      $region46: #{tpu_custom_call.1} parent=43 // pred_check_branch
        %559 = sbr.rel (%p557) target = $region48
      $region47: #{tpu_custom_call.1} parent=43 // pred_region
        %s560 = smul.u32 16, %s17
        %p561 = scmp.lt.s32.totalorder %s560, 47
        %s562 = scalar_select %p561, %s560, 47
        %s563 = smul.addr %s562, 4
        %s564 = scalar_lea.vmem %s3, %s563
      $region48: #{tpu_custom_call.1} parent=43 // pred_fallthru
        _
      // Predicated region
      $region49: #{tpu_custom_call.1} parent=43 // pred_check
        %p565 = pneg %p134
      $region50: #{tpu_custom_call.1} parent=43 // pred_check_branch
        %567 = sbr.rel (%p565) target = $region52
      $region51: #{tpu_custom_call.1} parent=43 // pred_region
        %s568 = smul.u32 16, %s17
        %p569 = scmp.lt.s32.totalorder %s568, 47
        %s570 = scalar_select %p569, %s568, 47
        %s571 = smul.addr %s570, 8
        %s572 = scalar_lea.vmem %s4, %s571
      $region52: #{tpu_custom_call.1} parent=43 // pred_fallthru
        _
    $region44: #{tpu_custom_call.1} parent=5 // pred_fallthru
      _
  $region6: #{tpu_custom_call.1} parent=0 // loop_footer
    %s15 = sadd.s32 1, %s11
  $region7: #{tpu_custom_call.1} parent=0 // loop_footer_branch
    %10 = sbr.rel target = $region3
  $region8: #{tpu_custom_call.1} parent=0 // loop_exit
    _

</llo_original>
